<compile_context>
chip_gen: v6e
topology: v6e:2x2x1
jax: 0.10.0
libtpu: 0.0.40
codegen_flags: <defaults>
</compile_context>

<pallas_src>
import jax
import jax.numpy as jnp
from jax.experimental import pallas as pl
from jax.experimental.pallas import tpu as pltpu

POOL_KS = (5, 9, 13)          # pool sizes of the original module
POOL_PAD = 2                  # halo of one cascaded 5x5 stage
NUM_BRANCHES = len(POOL_KS) + 1


# ----------------------------------------------------------------------------
# Kernel 1: cv1 = 1x1 conv (matmul over channels) + folded BatchNorm + SiLU,
# tiled over the flattened spatial/batch dimension M = N*H*W.
# ----------------------------------------------------------------------------
def _pointwise_conv_bn_silu_kernel(x_ref, w_ref, scale_ref, bias_ref, o_ref):
    # x: (TM, Cin)  w: (Cin, Cout)  scale/bias: (1, Cout)  o: (TM, Cout)
    y = jnp.dot(x_ref[...], w_ref[...], preferred_element_type=jnp.float32)
    y = y * scale_ref[...] + bias_ref[...]                 # folded BN (eval)
    o_ref[...] = (y * jax.nn.sigmoid(y)).astype(o_ref.dtype)   # SiLU


def pointwise_conv_bn_silu(x2d, w, scale, bias, *, tm=256):
    m, cin = x2d.shape
    cout = w.shape[1]
    # Tile size: multiple of 8 sublanes; sized so double-buffered in+out tiles
    # stay far below VMEM limits on every generation (v7x included).
    if m <= tm:
        tm = m
    grid = (pl.cdiv(m, tm),)

    flops = 2 * m * cin * cout
    bytes_accessed = 4 * (m * cin + cin * cout + 2 * cout + m * cout)

    return pl.pallas_call(
        _pointwise_conv_bn_silu_kernel,
        out_shape=jax.ShapeDtypeStruct((m, cout), jnp.float32),
        grid=grid,
        in_specs=[
            pl.BlockSpec((tm, cin), lambda i: (i, 0)),
            pl.BlockSpec((cin, cout), lambda i: (0, 0)),   # weights stay resident
            pl.BlockSpec((1, cout), lambda i: (0, 0)),
            pl.BlockSpec((1, cout), lambda i: (0, 0)),
        ],
        out_specs=pl.BlockSpec((tm, cout), lambda i: (i, 0)),
        compiler_params=pltpu.CompilerParams(
            dimension_semantics=("parallel",)),
        cost_estimate=pl.CostEstimate(
            flops=flops, transcendentals=m * cout,
            bytes_accessed=bytes_accessed),
    )(x2d, w, scale, bias)


# ----------------------------------------------------------------------------
# Kernel 2 (fused): cascaded separable max-pools (5 -> 9 -> 13) + channel
# concat + cv2 (1x1 conv + folded BN + SiLU), gridded over the batch.
# The 4*C concat tensor never leaves VMEM.
# ----------------------------------------------------------------------------
def _spp_pool_cv2_kernel(x_ref, w_ref, scale_ref, bias_ref, o_ref,
                         pad_ref, row_ref, acc_ref):
    # x_ref:   (1, H, W, C)   one batch element of cv1's output
    # w_ref:   (4*C, c2)      cv2 weight (row blocks: [id, p5, p9, p13])
    # scale/bias: (1, c2)     folded BN of cv2
    # o_ref:   (1, H, W, c2)
    # pad_ref: (H+4, W+4, C)  -inf-halo scratch for one 5x5 pool stage
    # row_ref: (H,   W+4, C)  scratch after the H-direction max
    # acc_ref: (H*W, c2) f32  cv2 accumulator
    _, H, W, C = x_ref.shape
    c2 = o_ref.shape[3]
    P = POOL_PAD

    x = x_ref[0]                                           # (H, W, C)

    # cv2 contribution of the identity branch.
    acc_ref[...] = jnp.dot(x.reshape(H * W, C), w_ref[0:C, :],
                           preferred_element_type=jnp.float32)

    # -inf halo written once; only the centre is refreshed per cascade level.
    pad_ref[...] = jnp.full((H + 2 * P, W + 2 * P, C), -jnp.inf, jnp.float32)

    cur = x
    for level in range(len(POOL_KS)):          # p5 = max5(x), p9 = max5(p5), ...
        pad_ref[P:P + H, P:P + W, :] = cur
        # Separable 5-tap max: H direction first (cheap leading-dim offsets).
        m = pad_ref[0:H, :, :]
        for d in range(1, 2 * P + 1):
            m = jnp.maximum(m, pad_ref[d:d + H, :, :])
        row_ref[...] = m                       # (H, W+4, C), -inf W-borders
        # Then W direction (sublane-axis slices of the small VMEM scratch).
        m = row_ref[:, 0:W, :]
        for d in range(1, 2 * P + 1):
            m = jnp.maximum(m, row_ref[:, d:d + W, :])
        cur = m                                # pooled result for this branch
        acc_ref[...] += jnp.dot(
            cur.reshape(H * W, C),
            w_ref[(level + 1) * C:(level + 2) * C, :],
            preferred_element_type=jnp.float32)

    y = acc_ref[...] * scale_ref[...] + bias_ref[...]      # folded BN (eval)
    y = y * jax.nn.sigmoid(y)                              # SiLU
    o_ref[...] = y.reshape(1, H, W, c2).astype(o_ref.dtype)


def spp_pool_cv2(y_nhwc, w2, scale2, bias2):
    n, h, w, c = y_nhwc.shape
    c2 = w2.shape[1]

    flops = 2 * n * h * w * (NUM_BRANCHES * c) * c2
    bytes_accessed = 4 * (n * h * w * c + NUM_BRANCHES * c * c2
                          + 2 * c2 + n * h * w * c2)

    return pl.pallas_call(
        _spp_pool_cv2_kernel,
        out_shape=jax.ShapeDtypeStruct((n, h, w, c2), jnp.float32),
        grid=(n,),
        in_specs=[
            pl.BlockSpec((1, h, w, c), lambda i: (i, 0, 0, 0)),
            pl.BlockSpec((NUM_BRANCHES * c, c2), lambda i: (0, 0)),
            pl.BlockSpec((1, c2), lambda i: (0, 0)),
            pl.BlockSpec((1, c2), lambda i: (0, 0)),
        ],
        out_specs=pl.BlockSpec((1, h, w, c2), lambda i: (i, 0, 0, 0)),
        scratch_shapes=[
            pltpu.VMEM((h + 2 * POOL_PAD, w + 2 * POOL_PAD, c), jnp.float32),
            pltpu.VMEM((h, w + 2 * POOL_PAD, c), jnp.float32),
            pltpu.VMEM((h * w, c2), jnp.float32),
        ],
        compiler_params=pltpu.CompilerParams(
            dimension_semantics=("parallel",)),
        cost_estimate=pl.CostEstimate(
            flops=flops, transcendentals=n * h * w * c2,
            bytes_accessed=bytes_accessed),
    )(y_nhwc, w2, scale2, bias2)


# ----------------------------------------------------------------------------
# Module wrapper
# ----------------------------------------------------------------------------
def bn_fold(gamma, beta, mean, var, eps=1e-5):
    scale = gamma / jnp.sqrt(var + eps)
    bias = beta - mean * scale
    return scale[None, :].astype(jnp.float32), bias[None, :].astype(jnp.float32)


def spp_forward(x_nchw, params):
    n, c1, h, w = x_nchw.shape
    x = jnp.transpose(x_nchw, (0, 2, 3, 1))                  # NCHW -> NHWC
    c_ = params["w1"].shape[1]

    # cv1: tiled 1x1 conv + BN + SiLU over M = N*H*W
    y = pointwise_conv_bn_silu(
        x.reshape(n * h * w, c1), params["w1"], params["scale1"], params["bias1"]
    ).reshape(n, h, w, c_)

    # fused: [x, max5, max9, max13] concat + cv2 (1x1 conv + BN + SiLU)
    out = spp_pool_cv2(y, params["w2"], params["scale2"], params["bias2"])

    return jnp.transpose(out, (0, 3, 1, 2))                  # NHWC -> NCHW


# ----------------------------------------------------------------------------
# Pure-JAX reference (for verification)
# ----------------------------------------------------------------------------
def spp_reference(x_nchw, params):
    x = jnp.transpose(x_nchw, (0, 2, 3, 1))

    def conv_bn_silu(v, w, scale, bias):
        y = jnp.einsum("nhwc,cd->nhwd", v, w) * scale[None, None] + bias[None, None]
        return y * jax.nn.sigmoid(y)

    y = conv_bn_silu(x, params["w1"], params["scale1"], params["bias1"])
    pools = [y]
    for k in POOL_KS:
        r = k // 2
        pools.append(
            jax.lax.reduce_window(
                y, -jnp.inf, jax.lax.max,
                window_dimensions=(1, k, k, 1),
                window_strides=(1, 1, 1, 1),
                padding=((0, 0), (r, r), (r, r), (0, 0)),
            )
        )
    cat = jnp.concatenate(pools, axis=-1)
    out = conv_bn_silu(cat, params["w2"], params["scale2"], params["bias2"])
    return jnp.transpose(out, (0, 3, 1, 2))


if __name__ == "__main__":
    # SPP(c1=8, c2=8), input x: (N=2, C=8, H=16, W=16)
    c1, c2 = 8, 8
    c_ = c1 // 2
    n, h, w = 2, 16, 16

    key = jax.random.PRNGKey(0)
    ks = jax.random.split(key, 11)
    x = jax.random.normal(ks[0], (n, c1, h, w), jnp.float32)

    # Deterministic synthetic parameters (conv weights stored as (Cin, Cout)).
    w1 = jax.random.normal(ks[1], (c1, c_), jnp.float32) * 0.2
    w2 = jax.random.normal(ks[2], (c_ * NUM_BRANCHES, c2), jnp.float32) * 0.2
    g1 = jax.random.uniform(ks[3], (c_,), minval=0.5, maxval=1.5)
    b1 = jax.random.normal(ks[4], (c_,)) * 0.1
    m1 = jax.random.normal(ks[5], (c_,)) * 0.1
    v1 = jax.random.uniform(ks[6], (c_,), minval=0.5, maxval=1.5)
    g2 = jax.random.uniform(ks[7], (c2,), minval=0.5, maxval=1.5)
    b2 = jax.random.normal(ks[8], (c2,)) * 0.1
    m2 = jax.random.normal(ks[9], (c2,)) * 0.1
    v2 = jax.random.uniform(ks[10], (c2,), minval=0.5, maxval=1.5)

    s1, bb1 = bn_fold(g1, b1, m1, v1)
    s2, bb2 = bn_fold(g2, b2, m2, v2)
    params = dict(w1=w1, scale1=s1, bias1=bb1, w2=w2, scale2=s2, bias2=bb2)

    out = jax.block_until_ready(spp_forward(x, params))
    ref = jax.block_until_ready(spp_reference(x, params))

    assert out.shape == (n, c2, h, w), out.shape
    assert jnp.allclose(out, ref, atol=1e-4, rtol=1e-4), float(
        jnp.max(jnp.abs(out - ref))
    )
    print("KERNEL_OK")
</pallas_src>

<mosaic_0001>
module attributes {stable_mosaic.version = 11 : i64} {
  func.func @_pointwise_conv_bn_silu_kernel(%arg0: i32, %arg1: memref<256x8xf32, #tpu.memory_space<vmem>>, %arg2: memref<8x4xf32, #tpu.memory_space<vmem>>, %arg3: memref<1x4xf32, #tpu.memory_space<vmem>>, %arg4: memref<1x4xf32, #tpu.memory_space<vmem>>, %arg5: memref<256x4xf32, #tpu.memory_space<vmem>>) attributes {dimension_semantics = [#tpu.dimension_semantics<parallel>], iteration_bounds = array<i64: 2>, scalar_prefetch = 0 : i64, scratch_operands = 0 : i64, tpu.core_type = #tpu.core_type<tc>, window_params = [{transform_indices = @transform_0, window_bounds = array<i64: 256, 8>}, {pipeline_mode = #tpu.pipeline_mode<synchronous>, transform_indices = @transform_1, window_bounds = array<i64: 8, 4>}, {pipeline_mode = #tpu.pipeline_mode<synchronous>, transform_indices = @transform_2, window_bounds = array<i64: 1, 4>}, {pipeline_mode = #tpu.pipeline_mode<synchronous>, transform_indices = @transform_3, window_bounds = array<i64: 1, 4>}, {transform_indices = @transform_4, window_bounds = array<i64: 256, 4>}]} {
    %c0 = arith.constant 0 : index
    %c0_0 = arith.constant 0 : index
    %0 = vector.load %arg1[%c0, %c0_0] : memref<256x8xf32, #tpu.memory_space<vmem>>, vector<256x8xf32>
    %c0_1 = arith.constant 0 : index
    %c0_2 = arith.constant 0 : index
    %1 = vector.load %arg2[%c0_1, %c0_2] : memref<8x4xf32, #tpu.memory_space<vmem>>, vector<8x4xf32>
    %cst = arith.constant dense<0.000000e+00> : vector<256x4xf32>
    %2 = tpu.matmul %0, %1, %cst {dimension_numbers = #tpu.dot_dimension_numbers<[1], [0], [0], [1], [0, 0, 1, 1], [], []>} : vector<256x8xf32>, vector<8x4xf32>, vector<256x4xf32> -> vector<256x4xf32>
    %c0_3 = arith.constant 0 : index
    %c0_4 = arith.constant 0 : index
    %3 = vector.load %arg3[%c0_3, %c0_4] : memref<1x4xf32, #tpu.memory_space<vmem>>, vector<1x4xf32>
    %4 = vector.broadcast %3 : vector<1x4xf32> to vector<256x4xf32>
    %5 = arith.mulf %2, %4 : vector<256x4xf32>
    %c0_5 = arith.constant 0 : index
    %c0_6 = arith.constant 0 : index
    %6 = vector.load %arg4[%c0_5, %c0_6] : memref<1x4xf32, #tpu.memory_space<vmem>>, vector<1x4xf32>
    %7 = vector.broadcast %6 : vector<1x4xf32> to vector<256x4xf32>
    %8 = arith.addf %5, %7 : vector<256x4xf32>
    %9 = arith.negf %8 : vector<256x4xf32>
    %10 = math.exp %9 : vector<256x4xf32>
    %cst_7 = arith.constant 1.000000e+00 : f32
    %11 = vector.broadcast %cst_7 : f32 to vector<256x4xf32>
    %12 = arith.addf %11, %10 : vector<256x4xf32>
    %13 = arith.divf %11, %12 : vector<256x4xf32>
    %14 = arith.mulf %8, %13 : vector<256x4xf32>
    %c0_8 = arith.constant 0 : index
    %c0_9 = arith.constant 0 : index
    %15 = vector.load %arg5[%c0_8, %c0_9] : memref<256x4xf32, #tpu.memory_space<vmem>>, vector<256x4xf32>
    tpu.vector_store %arg5[%c0_8, %c0_9], %14 {strides = array<i32>} : memref<256x4xf32, #tpu.memory_space<vmem>>, vector<256x4xf32>,
    return
  }
  func.func @transform_0(%arg0: i32) -> (i32, i32) {
    %c0_i32 = arith.constant 0 : i32
    %c0_i32_0 = arith.constant 0 : i32
    return %arg0, %c0_i32 : i32, i32
  }
  func.func @transform_1(%arg0: i32) -> (i32, i32) {
    %c0_i32 = arith.constant 0 : i32
    %c0_i32_0 = arith.constant 0 : i32
    %c0_i32_1 = arith.constant 0 : i32
    return %c0_i32, %c0_i32_0 : i32, i32
  }
  func.func @transform_2(%arg0: i32) -> (i32, i32) {
    %c0_i32 = arith.constant 0 : i32
    %c0_i32_0 = arith.constant 0 : i32
    %c0_i32_1 = arith.constant 0 : i32
    return %c0_i32, %c0_i32_0 : i32, i32
  }
  func.func @transform_3(%arg0: i32) -> (i32, i32) {
    %c0_i32 = arith.constant 0 : i32
    %c0_i32_0 = arith.constant 0 : i32
    %c0_i32_1 = arith.constant 0 : i32
    return %c0_i32, %c0_i32_0 : i32, i32
  }
  func.func @transform_4(%arg0: i32) -> (i32, i32) {
    %c0_i32 = arith.constant 0 : i32
    %c0_i32_0 = arith.constant 0 : i32
    return %arg0, %c0_i32 : i32, i32
  }
}

</mosaic_0001>

<llo_original>
// kernel: tpu_custom_call.1
$region0: #{tpu_custom_call.1}
  #allocation0 [shape = 'u32[]', space=smem, size = 0x4, offset = 0x4, fixed_abs, tag = 'smem constant byte address 0x4 - core index']
  #allocation1 [shape = 'u32[144,128]{1,0:T(1,128)}', space=vmem, size = 0x12000, scoped, tag = 'internal scratch']
  %s0 = inlined_call_operand.vmem [shape: f32[512,8], index: 0, kind: input, shape index: {}]
  %s1 = inlined_call_operand.vmem [shape: f32[8,4], index: 1, kind: input, shape index: {}]
  %s2 = inlined_call_operand.vmem [shape: f32[1,4], index: 2, kind: input, shape index: {}]
  %s3 = inlined_call_operand.vmem [shape: f32[1,4], index: 3, kind: input, shape index: {}]
  %s4 = inlined_call_operand.vmem [shape: f32[512,4], index: 4, kind: output, shape index: {}]
  %s5 = sld [smem:[#allocation0]]
  $region49: #{tpu_custom_call.1} parent=0
    _
  %s7 = ssub.s32 1, %s5
  %s8 = scalar_select 0, %s7, %s5
  loop: start=0, step=1, limit=4
  $region2: #{tpu_custom_call.1} parent=0 // loop_pre_header
    _
  $region3: #{tpu_custom_call.1} parent=0 // loop_header
    %s10 = sphi 0, %s14
    %p11 = scmp.ge.s32.totalorder %s10, 4
    %s20 = sphi 0, %s22
    %s23 = sphi 0, %s20
    %s24 = sphi 0, %s23
    %s40 = sphi 0, %s24
    %s44 = sphi 0, %s44
    %s46 = sphi 0, %s44
    %s47 = sphi 0, %s46
    %s61 = sphi 0, %s47
    %s65 = sphi 0, %s65
    %s67 = sphi 0, %s65
    %s68 = sphi 0, %s67
    %s82 = sphi 0, %s68
    %s86 = sphi 0, %s86
    %s88 = sphi 0, %s86
    %s89 = sphi 0, %s88
    %s103 = sphi 0, %s89
    %s109 = sphi 0, %s111
    %s112 = sphi 0, %s109
    %s113 = sphi 0, %s112
    %s129 = sphi 0, %s113
  $region4: #{tpu_custom_call.1} parent=0 // loop_header_branch
    %13 = sbr.rel (%p11) target = $region8
  $region5: #{tpu_custom_call.1} parent=0 // loop_body
    %s15 = ssub.s32 %s10, 1
    %s16 = ssub.s32 %s10, 2
    %s17 = sadd.s32 %s10, 1
    %s18 = ssub.s32 %s10, %s17
    %p19 = scmp.eq.s32.totalorder %s18, 0
    %s21 = sadd.s32 %s20, 1
    %s22 = scalar_select %p19, %s20, %s21
    %p25 = pneg %p19
    %p26 = scmp.eq.s32.totalorder %s10, 1
    %p27 = por %p25, %p26
    %p28 = scmp.ne.s32.totalorder %s20, %s23
    %p29 = scmp.eq.s32.totalorder %s10, 0
    %p30 = por %p28, %p29
    %p31 = scmp.ne.s32.totalorder %s20, %s23
    %p32 = scmp.eq.s32.totalorder %s15, 1
    %p33 = por %p31, %p32
    %p34 = scmp.ne.s32.totalorder %s23, %s24
    %p35 = scmp.eq.s32.totalorder %s15, 0
    %p36 = por %p34, %p35
    %p37 = scmp.ne.s32.totalorder %s23, %s24
    %p38 = scmp.eq.s32.totalorder %s16, 1
    %p39 = por %p37, %p38
    %p41 = scmp.ne.s32.totalorder %s24, %s40
    %p42 = scmp.eq.s32.totalorder %s16, 0
    %p43 = por %p41, %p42
    %s45 = sadd.s32 %s44, 1
    %p48 = scmp.eq.s32.totalorder %s10, 1
    %p49 = scmp.ne.s32.totalorder %s44, %s46
    %p50 = scmp.eq.s32.totalorder %s10, 0
    %p51 = por %p49, %p50
    %p52 = scmp.ne.s32.totalorder %s44, %s46
    %p53 = scmp.eq.s32.totalorder %s15, 1
    %p54 = por %p52, %p53
    %p55 = scmp.ne.s32.totalorder %s46, %s47
    %p56 = scmp.eq.s32.totalorder %s15, 0
    %p57 = por %p55, %p56
    %p58 = scmp.ne.s32.totalorder %s46, %s47
    %p59 = scmp.eq.s32.totalorder %s16, 1
    %p60 = por %p58, %p59
    %p62 = scmp.ne.s32.totalorder %s47, %s61
    %p63 = scmp.eq.s32.totalorder %s16, 0
    %p64 = por %p62, %p63
    %s66 = sadd.s32 %s65, 1
    %p69 = scmp.eq.s32.totalorder %s10, 1
    %p70 = scmp.ne.s32.totalorder %s65, %s67
    %p71 = scmp.eq.s32.totalorder %s10, 0
    %p72 = por %p70, %p71
    %p73 = scmp.ne.s32.totalorder %s65, %s67
    %p74 = scmp.eq.s32.totalorder %s15, 1
    %p75 = por %p73, %p74
    %p76 = scmp.ne.s32.totalorder %s67, %s68
    %p77 = scmp.eq.s32.totalorder %s15, 0
    %p78 = por %p76, %p77
    %p79 = scmp.ne.s32.totalorder %s67, %s68
    %p80 = scmp.eq.s32.totalorder %s16, 1
    %p81 = por %p79, %p80
    %p83 = scmp.ne.s32.totalorder %s68, %s82
    %p84 = scmp.eq.s32.totalorder %s16, 0
    %p85 = por %p83, %p84
    %s87 = sadd.s32 %s86, 1
    %p90 = scmp.eq.s32.totalorder %s10, 1
    %p91 = scmp.ne.s32.totalorder %s86, %s88
    %p92 = scmp.eq.s32.totalorder %s10, 0
    %p93 = por %p91, %p92
    %p94 = scmp.ne.s32.totalorder %s86, %s88
    %p95 = scmp.eq.s32.totalorder %s15, 1
    %p96 = por %p94, %p95
    %p97 = scmp.ne.s32.totalorder %s88, %s89
    %p98 = scmp.eq.s32.totalorder %s15, 0
    %p99 = por %p97, %p98
    %p100 = scmp.ne.s32.totalorder %s88, %s89
    %p101 = scmp.eq.s32.totalorder %s16, 1
    %p102 = por %p100, %p101
    %p104 = scmp.ne.s32.totalorder %s89, %s103
    %p105 = scmp.eq.s32.totalorder %s16, 0
    %p106 = por %p104, %p105
    %s107 = ssub.s32 %s10, %s17
    %p108 = scmp.eq.s32.totalorder %s107, 0
    %s110 = sadd.s32 %s109, 1
    %s111 = scalar_select %p108, %s109, %s110
    %p114 = pneg %p108
    %p115 = scmp.eq.s32.totalorder %s10, 1
    %p116 = por %p114, %p115
    %p117 = scmp.ne.s32.totalorder %s109, %s112
    %p118 = scmp.eq.s32.totalorder %s10, 0
    %p119 = por %p117, %p118
    %p120 = scmp.ne.s32.totalorder %s109, %s112
    %p121 = scmp.eq.s32.totalorder %s15, 1
    %p122 = por %p120, %p121
    %p123 = scmp.ne.s32.totalorder %s112, %s113
    %p124 = scmp.eq.s32.totalorder %s15, 0
    %p125 = por %p123, %p124
    %p126 = scmp.ne.s32.totalorder %s112, %s113
    %p127 = scmp.eq.s32.totalorder %s16, 1
    %p128 = por %p126, %p127
    %p130 = scmp.ne.s32.totalorder %s113, %s129
    %p131 = scmp.eq.s32.totalorder %s16, 0
    %p132 = por %p130, %p131
    %p133 = scmp.le.s32.totalorder 1, %s10
    %p134 = scmp.lt.s32.totalorder %s10, 3
    %p135 = pnand %p133, %p134
    %p136 = pneg %p135
    // Predicated region
    $region9: #{tpu_custom_call.1} parent=5 // pred_check
      _
    $region10: #{tpu_custom_call.1} parent=5 // pred_check_branch
      %138 = sbr.rel (%p135) target = $region12
    $region11: #{tpu_custom_call.1} parent=5 // pred_region
      %s139 = ssub.s32 %s10, 1
      // Predicated region
      $region13: #{tpu_custom_call.1} parent=11 // pred_check
        %p140 = pneg %p57
      $region14: #{tpu_custom_call.1} parent=11 // pred_check_branch
        %142 = sbr.rel (%p140) target = $region16
      $region15: #{tpu_custom_call.1} parent=11 // pred_region
        _
      $region16: #{tpu_custom_call.1} parent=11 // pred_fallthru
        _
      // Predicated region
      $region17: #{tpu_custom_call.1} parent=11 // pred_check
        %p143 = pneg %p78
      $region18: #{tpu_custom_call.1} parent=11 // pred_check_branch
        %145 = sbr.rel (%p143) target = $region20
      $region19: #{tpu_custom_call.1} parent=11 // pred_region
        _
      $region20: #{tpu_custom_call.1} parent=11 // pred_fallthru
        _
      // Predicated region
      $region21: #{tpu_custom_call.1} parent=11 // pred_check
        %p146 = pneg %p99
      $region22: #{tpu_custom_call.1} parent=11 // pred_check_branch
        %148 = sbr.rel (%p146) target = $region24
      $region23: #{tpu_custom_call.1} parent=11 // pred_region
        _
      $region24: #{tpu_custom_call.1} parent=11 // pred_fallthru
        _
    $region12: #{tpu_custom_call.1} parent=5 // pred_fallthru
      _
    %p149 = scmp.lt.s32.totalorder %s10, 2
    // Predicated region
    $region25: #{tpu_custom_call.1} parent=5 // pred_check
      %p150 = pneg %p149
    $region26: #{tpu_custom_call.1} parent=5 // pred_check_branch
      %152 = sbr.rel (%p150) target = $region28
    $region27: #{tpu_custom_call.1} parent=5 // pred_region
      // Predicated region
      $region29: #{tpu_custom_call.1} parent=27 // pred_check
        %p153 = pneg %p30
      $region30: #{tpu_custom_call.1} parent=27 // pred_check_branch
        %155 = sbr.rel (%p153) target = $region32
      $region31: #{tpu_custom_call.1} parent=27 // pred_region
        %s156 = smul.u32 32, %s10
        %p157 = scmp.lt.s32.totalorder %s156, 63
        %s158 = scalar_select %p157, %s156, 63
        %s159 = smul.addr %s158, 8
        %s160 = scalar_lea.vmem %s0, %s159
        %s161 = smul.u32 32, %s10
      $region32: #{tpu_custom_call.1} parent=27 // pred_fallthru
        _
    $region28: #{tpu_custom_call.1} parent=5 // pred_fallthru
      _
    %p162 = scmp.le.s32.totalorder 1, %s10
    %p163 = scmp.lt.s32.totalorder %s10, 3
    %p164 = pnand %p162, %p163
    %p165 = pneg %p164
    // Predicated region
    $region33: #{tpu_custom_call.1} parent=5 // pred_check
      _
    $region34: #{tpu_custom_call.1} parent=5 // pred_check_branch
      %167 = sbr.rel (%p164) target = $region36
    $region35: #{tpu_custom_call.1} parent=5 // pred_region
      %s168 = ssub.s32 %s10, 1
      %s169 = smul.u32 32, %s15
      %p170 = scmp.lt.s32.totalorder %s169, 63
      %s171 = scalar_select %p170, %s169, 63
      %s172 = smul.addr %s171, 8
      %s173 = scalar_lea.vmem %s0, %s172
      %p174 = pneg %p36
      %p175 = pneg %p33
      %p176 = pneg %p57
      %p177 = pneg %p54
      %p178 = pneg %p78
      %p179 = pneg %p75
      %p180 = pneg %p99
      %p181 = pneg %p96
      %p182 = pneg %p125
      %p183 = pneg %p122
      %s184 = smul.u32 32, %s15
      %p185 = scmp.lt.s32.totalorder %s184, 63
      %s186 = scalar_select %p185, %s184, 63
      %s187 = smul.addr %s186, 8
      %s188 = scalar_lea.vmem %s4, %s187
      %s189 = smul.u32 32, %s15
      %p190 = scmp.lt.s32.totalorder %s189, 63
      %s191 = scalar_select %p190, %s189, 63
      %s192 = smul.addr %s191, 8
      %s193 = scalar_lea.vmem %s0, %s192
      %s194 = smul.u32 32, %s15
      %s195 = smul.u32 32, %s15
      %p196 = scmp.lt.s32.totalorder %s195, 63
      %s197 = scalar_select %p196, %s195, 63
      %s198 = smul.addr %s197, 8
      %s199 = scalar_lea.vmem %s4, %s198
      %s200 = smul.u32 32, %s15
      %v201 = vld [vmem:[%s193] sm:$0xff]
      %v202 = vld [vmem:[%s193 + $0x8] sm:$0xff]
      %v203 = vld [vmem:[%s193 + $0x10] sm:$0xff]
      %v204 = vld [vmem:[%s193 + $0x18] sm:$0xff]
      %v205 = vld [vmem:[%s193 + $0x20] sm:$0xff]
      %v206 = vld [vmem:[%s193 + $0x28] sm:$0xff]
      %v207 = vld [vmem:[%s193 + $0x30] sm:$0xff]
      %v208 = vld [vmem:[%s193 + $0x38] sm:$0xff]
      %v209 = vld [vmem:[%s193 + $0x40] sm:$0xff]
      %v210 = vld [vmem:[%s193 + $0x48] sm:$0xff]
      %v211 = vld [vmem:[%s193 + $0x50] sm:$0xff]
      %v212 = vld [vmem:[%s193 + $0x58] sm:$0xff]
      %v213 = vld [vmem:[%s193 + $0x60] sm:$0xff]
      %v214 = vld [vmem:[%s193 + $0x68] sm:$0xff]
      %v215 = vld [vmem:[%s193 + $0x70] sm:$0xff]
      %v216 = vld [vmem:[%s193 + $0x78] sm:$0xff]
      %v217 = vld [vmem:[%s193 + $0x80] sm:$0xff]
      %v218 = vld [vmem:[%s193 + $0x88] sm:$0xff]
      %v219 = vld [vmem:[%s193 + $0x90] sm:$0xff]
      %v220 = vld [vmem:[%s193 + $0x98] sm:$0xff]
      %v221 = vld [vmem:[%s193 + $0xa0] sm:$0xff]
      %v222 = vld [vmem:[%s193 + $0xa8] sm:$0xff]
      %v223 = vld [vmem:[%s193 + $0xb0] sm:$0xff]
      %v224 = vld [vmem:[%s193 + $0xb8] sm:$0xff]
      %v225 = vld [vmem:[%s193 + $0xc0] sm:$0xff]
      %v226 = vld [vmem:[%s193 + $0xc8] sm:$0xff]
      %v227 = vld [vmem:[%s193 + $0xd0] sm:$0xff]
      %v228 = vld [vmem:[%s193 + $0xd8] sm:$0xff]
      %v229 = vld [vmem:[%s193 + $0xe0] sm:$0xff]
      %v230 = vld [vmem:[%s193 + $0xe8] sm:$0xff]
      %v231 = vld [vmem:[%s193 + $0xf0] sm:$0xff]
      %v232 = vld [vmem:[%s193 + $0xf8] sm:$0xff]
      %v233 = vld [vmem:[%s1] sm:$0xff]
      %vm234 = vcmask 64512
      %v236 = vsel %vm234, %v201, 0
      %v239 = vsel %vm234, %v202, 0
      %v242 = vsel %vm234, %v203, 0
      %v245 = vsel %vm234, %v204, 0
      %v248 = vsel %vm234, %v205, 0
      %v251 = vsel %vm234, %v206, 0
      %v254 = vsel %vm234, %v207, 0
      %v257 = vsel %vm234, %v208, 0
      %v260 = vsel %vm234, %v209, 0
      %v263 = vsel %vm234, %v210, 0
      %v266 = vsel %vm234, %v211, 0
      %v269 = vsel %vm234, %v212, 0
      %v272 = vsel %vm234, %v213, 0
      %v275 = vsel %vm234, %v214, 0
      %v278 = vsel %vm234, %v215, 0
      %v281 = vsel %vm234, %v216, 0
      %v284 = vsel %vm234, %v217, 0
      %v287 = vsel %vm234, %v218, 0
      %v290 = vsel %vm234, %v219, 0
      %v293 = vsel %vm234, %v220, 0
      %v296 = vsel %vm234, %v221, 0
      %v299 = vsel %vm234, %v222, 0
      %v302 = vsel %vm234, %v223, 0
      %v305 = vsel %vm234, %v224, 0
      %v308 = vsel %vm234, %v225, 0
      %v311 = vsel %vm234, %v226, 0
      %v314 = vsel %vm234, %v227, 0
      %v317 = vsel %vm234, %v228, 0
      %v320 = vsel %vm234, %v229, 0
      %v323 = vsel %vm234, %v230, 0
      %v326 = vsel %vm234, %v231, 0
      %v329 = vsel %vm234, %v232, 0
      %331 = vmatprep.subr.mxu0 0.0
      %332 = vmatpush1.msra.mxu0 0.0
      %333 = vmatprep.subr.mxu0 0.0
      %334 = vmatpush1.msra.mxu0 0.0
      %335 = vmatprep.subr.mxu0 0.0
      %336 = vmatpush1.msra.mxu0 0.0
      %337 = vmatprep.subr.mxu0 0.0
      %338 = vmatpush1.msra.mxu0 0.0
      %339 = vmatprep.subr.mxu0 0.0
      %340 = vmatpush1.msra.mxu0 0.0
      %341 = vmatprep.subr.mxu0 0.0
      %342 = vmatpush1.msra.mxu0 0.0
      %343 = vmatprep.subr.mxu0 0.0
      %344 = vmatpush1.msra.mxu0 0.0
      %345 = vmatprep.subr.mxu0 0.0
      %346 = vmatpush1.msra.mxu0 0.0
      %347 = vmatprep.subr.mxu0 0.0
      %348 = vmatpush1.msra.mxu0 0.0
      %349 = vmatprep.subr.mxu0 0.0
      %350 = vmatpush1.msra.mxu0 0.0
      %351 = vmatprep.subr.mxu0 0.0
      %352 = vmatpush1.msra.mxu0 0.0
      %353 = vmatprep.subr.mxu0 0.0
      %354 = vmatpush1.msra.mxu0 0.0
      %355 = vmatprep.subr.mxu0 0.0
      %356 = vmatpush1.msra.mxu0 0.0
      %357 = vmatprep.subr.mxu0 0.0
      %358 = vmatpush1.msra.mxu0 0.0
      %359 = vmatprep.subr.mxu0 0.0
      %360 = vmatpush1.msra.mxu0 0.0
      %361 = vmatprep.subr.mxu0 0.0
      %362 = vmatpush1.msra.mxu0 %v233
      %363 = vmatprep.subr.mxu0 0.0
      %364 = vmatpush2.msra.mxu0 0.0
      %365 = vmatprep.subr.mxu0 0.0
      %366 = vmatpush2.msra.mxu0 0.0
      %367 = vmatprep.subr.mxu0 0.0
      %368 = vmatpush2.msra.mxu0 0.0
      %369 = vmatprep.subr.mxu0 0.0
      %370 = vmatpush2.msra.mxu0 0.0
      %371 = vmatprep.subr.mxu0 0.0
      %372 = vmatpush2.msra.mxu0 0.0
      %373 = vmatprep.subr.mxu0 0.0
      %374 = vmatpush2.msra.mxu0 0.0
      %375 = vmatprep.subr.mxu0 0.0
      %376 = vmatpush2.msra.mxu0 0.0
      %377 = vmatprep.subr.mxu0 0.0
      %378 = vmatpush2.msra.mxu0 0.0
      %379 = vmatprep.subr.mxu0 0.0
      %380 = vmatpush2.msra.mxu0 0.0
      %381 = vmatprep.subr.mxu0 0.0
      %382 = vmatpush2.msra.mxu0 0.0
      %383 = vmatprep.subr.mxu0 0.0
      %384 = vmatpush2.msra.mxu0 0.0
      %385 = vmatprep.subr.mxu0 0.0
      %386 = vmatpush2.msra.mxu0 0.0
      %387 = vmatprep.subr.mxu0 0.0
      %388 = vmatpush2.msra.mxu0 0.0
      %389 = vmatprep.subr.mxu0 0.0
      %390 = vmatpush2.msra.mxu0 0.0
      %391 = vmatprep.subr.mxu0 0.0
      %392 = vmatpush2.msra.mxu0 0.0
      %393 = vmatprep.subr.mxu0 0.0
      %394 = vmatpush2.msra.mxu0 0.0
      %395 = vmatprep.mubr.f32.mxu0 0.0
      %396 = vmatmul.mubr.f32.gmra.mxu0 %v236
      %v397 = vpop.f32.mrf.mxu0
      %v398 = vadd.f32 0.0, %v397
      %v399 = vpop.f32.mrf.mxu0
      %400 = vmatprep.mubr.f32.mxu0 0.0
      %401 = vmatmul.mubr.f32.gmra.mxu0 %v239
      %v402 = vpop.f32.mrf.mxu0
      %v403 = vadd.f32 0.0, %v402
      %v404 = vpop.f32.mrf.mxu0
      %405 = vmatprep.mubr.f32.mxu0 0.0
      %406 = vmatmul.mubr.f32.gmra.mxu0 %v242
      %v407 = vpop.f32.mrf.mxu0
      %v408 = vadd.f32 0.0, %v407
      %v409 = vpop.f32.mrf.mxu0
      %410 = vmatprep.mubr.f32.mxu0 0.0
      %411 = vmatmul.mubr.f32.gmra.mxu0 %v245
      %v412 = vpop.f32.mrf.mxu0
      %v413 = vadd.f32 0.0, %v412
      %v414 = vpop.f32.mrf.mxu0
      %415 = vmatprep.mubr.f32.mxu0 0.0
      %416 = vmatmul.mubr.f32.gmra.mxu0 %v248
      %v417 = vpop.f32.mrf.mxu0
      %v418 = vadd.f32 0.0, %v417
      %v419 = vpop.f32.mrf.mxu0
      %420 = vmatprep.mubr.f32.mxu0 0.0
      %421 = vmatmul.mubr.f32.gmra.mxu0 %v251
      %v422 = vpop.f32.mrf.mxu0
      %v423 = vadd.f32 0.0, %v422
      %v424 = vpop.f32.mrf.mxu0
      %425 = vmatprep.mubr.f32.mxu0 0.0
      %426 = vmatmul.mubr.f32.gmra.mxu0 %v254
      %v427 = vpop.f32.mrf.mxu0
      %v428 = vadd.f32 0.0, %v427
      %v429 = vpop.f32.mrf.mxu0
      %430 = vmatprep.mubr.f32.mxu0 0.0
      %431 = vmatmul.mubr.f32.gmra.mxu0 %v257
      %v432 = vpop.f32.mrf.mxu0
      %v433 = vadd.f32 0.0, %v432
      %v434 = vpop.f32.mrf.mxu0
      %435 = vmatprep.mubr.f32.mxu0 0.0
      %436 = vmatmul.mubr.f32.gmra.mxu0 %v260
      %v437 = vpop.f32.mrf.mxu0
      %v438 = vadd.f32 0.0, %v437
      %v439 = vpop.f32.mrf.mxu0
      %440 = vmatprep.mubr.f32.mxu0 0.0
      %441 = vmatmul.mubr.f32.gmra.mxu0 %v263
      %v442 = vpop.f32.mrf.mxu0
      %v443 = vadd.f32 0.0, %v442
      %v444 = vpop.f32.mrf.mxu0
      %445 = vmatprep.mubr.f32.mxu0 0.0
      %446 = vmatmul.mubr.f32.gmra.mxu0 %v266
      %v447 = vpop.f32.mrf.mxu0
      %v448 = vadd.f32 0.0, %v447
      %v449 = vpop.f32.mrf.mxu0
      %450 = vmatprep.mubr.f32.mxu0 0.0
      %451 = vmatmul.mubr.f32.gmra.mxu0 %v269
      %v452 = vpop.f32.mrf.mxu0
      %v453 = vadd.f32 0.0, %v452
      %v454 = vpop.f32.mrf.mxu0
      %455 = vmatprep.mubr.f32.mxu0 0.0
      %456 = vmatmul.mubr.f32.gmra.mxu0 %v272
      %v457 = vpop.f32.mrf.mxu0
      %v458 = vadd.f32 0.0, %v457
      %v459 = vpop.f32.mrf.mxu0
      %460 = vmatprep.mubr.f32.mxu0 0.0
      %461 = vmatmul.mubr.f32.gmra.mxu0 %v275
      %v462 = vpop.f32.mrf.mxu0
      %v463 = vadd.f32 0.0, %v462
      %v464 = vpop.f32.mrf.mxu0
      %465 = vmatprep.mubr.f32.mxu0 0.0
      %466 = vmatmul.mubr.f32.gmra.mxu0 %v278
      %v467 = vpop.f32.mrf.mxu0
      %v468 = vadd.f32 0.0, %v467
      %v469 = vpop.f32.mrf.mxu0
      %470 = vmatprep.mubr.f32.mxu0 0.0
      %471 = vmatmul.mubr.f32.gmra.mxu0 %v281
      %v472 = vpop.f32.mrf.mxu0
      %v473 = vadd.f32 0.0, %v472
      %v474 = vpop.f32.mrf.mxu0
      %475 = vmatprep.mubr.f32.mxu0 0.0
      %476 = vmatmul.mubr.f32.gmra.mxu0 %v284
      %v477 = vpop.f32.mrf.mxu0
      %v478 = vadd.f32 0.0, %v477
      %v479 = vpop.f32.mrf.mxu0
      %480 = vmatprep.mubr.f32.mxu0 0.0
      %481 = vmatmul.mubr.f32.gmra.mxu0 %v287
      %v482 = vpop.f32.mrf.mxu0
      %v483 = vadd.f32 0.0, %v482
      %v484 = vpop.f32.mrf.mxu0
      %485 = vmatprep.mubr.f32.mxu0 0.0
      %486 = vmatmul.mubr.f32.gmra.mxu0 %v290
      %v487 = vpop.f32.mrf.mxu0
      %v488 = vadd.f32 0.0, %v487
      %v489 = vpop.f32.mrf.mxu0
      %490 = vmatprep.mubr.f32.mxu0 0.0
      %491 = vmatmul.mubr.f32.gmra.mxu0 %v293
      %v492 = vpop.f32.mrf.mxu0
      %v493 = vadd.f32 0.0, %v492
      %v494 = vpop.f32.mrf.mxu0
      %495 = vmatprep.mubr.f32.mxu0 0.0
      %496 = vmatmul.mubr.f32.gmra.mxu0 %v296
      %v497 = vpop.f32.mrf.mxu0
      %v498 = vadd.f32 0.0, %v497
      %v499 = vpop.f32.mrf.mxu0
      %500 = vmatprep.mubr.f32.mxu0 0.0
      %501 = vmatmul.mubr.f32.gmra.mxu0 %v299
      %v502 = vpop.f32.mrf.mxu0
      %v503 = vadd.f32 0.0, %v502
      %v504 = vpop.f32.mrf.mxu0
      %505 = vmatprep.mubr.f32.mxu0 0.0
      %506 = vmatmul.mubr.f32.gmra.mxu0 %v302
      %v507 = vpop.f32.mrf.mxu0
      %v508 = vadd.f32 0.0, %v507
      %v509 = vpop.f32.mrf.mxu0
      %510 = vmatprep.mubr.f32.mxu0 0.0
      %511 = vmatmul.mubr.f32.gmra.mxu0 %v305
      %v512 = vpop.f32.mrf.mxu0
      %v513 = vadd.f32 0.0, %v512
      %v514 = vpop.f32.mrf.mxu0
      %515 = vmatprep.mubr.f32.mxu0 0.0
      %516 = vmatmul.mubr.f32.gmra.mxu0 %v308
      %v517 = vpop.f32.mrf.mxu0
      %v518 = vadd.f32 0.0, %v517
      %v519 = vpop.f32.mrf.mxu0
      %520 = vmatprep.mubr.f32.mxu0 0.0
      %521 = vmatmul.mubr.f32.gmra.mxu0 %v311
      %v522 = vpop.f32.mrf.mxu0
      %v523 = vadd.f32 0.0, %v522
      %v524 = vpop.f32.mrf.mxu0
      %525 = vmatprep.mubr.f32.mxu0 0.0
      %526 = vmatmul.mubr.f32.gmra.mxu0 %v314
      %v527 = vpop.f32.mrf.mxu0
      %v528 = vadd.f32 0.0, %v527
      %v529 = vpop.f32.mrf.mxu0
      %530 = vmatprep.mubr.f32.mxu0 0.0
      %531 = vmatmul.mubr.f32.gmra.mxu0 %v317
      %v532 = vpop.f32.mrf.mxu0
      %v533 = vadd.f32 0.0, %v532
      %v534 = vpop.f32.mrf.mxu0
      %535 = vmatprep.mubr.f32.mxu0 0.0
      %536 = vmatmul.mubr.f32.gmra.mxu0 %v320
      %v537 = vpop.f32.mrf.mxu0
      %v538 = vadd.f32 0.0, %v537
      %v539 = vpop.f32.mrf.mxu0
      %540 = vmatprep.mubr.f32.mxu0 0.0
      %541 = vmatmul.mubr.f32.gmra.mxu0 %v323
      %v542 = vpop.f32.mrf.mxu0
      %v543 = vadd.f32 0.0, %v542
      %v544 = vpop.f32.mrf.mxu0
      %545 = vmatprep.mubr.f32.mxu0 0.0
      %546 = vmatmul.mubr.f32.gmra.mxu0 %v326
      %v547 = vpop.f32.mrf.mxu0
      %v548 = vadd.f32 0.0, %v547
      %v549 = vpop.f32.mrf.mxu0
      %550 = vmatprep.mubr.f32.mxu0 0.0
      %551 = vmatmul.mubr.f32.gmra.mxu0 %v329
      %v552 = vpop.f32.mrf.mxu0
      %v553 = vadd.f32 0.0, %v552
      %v554 = vpop.f32.mrf.mxu0
      %555 = vdwg.mxu0
      %v556 = vld [vmem:[%s2] sm:$0x1]
      %v558 = vlaneseq
      %v559 = vshrl.u32 %v558, 7
      %v560 = vsub.s32 0, %v559
      %v561 = vrot.slane %v556, %v560
      %v563 = vmul.f32 %v398, %v561
      %v564 = vmul.f32 %v403, %v561
      %v565 = vmul.f32 %v408, %v561
      %v566 = vmul.f32 %v413, %v561
      %v567 = vmul.f32 %v418, %v561
      %v568 = vmul.f32 %v423, %v561
      %v569 = vmul.f32 %v428, %v561
      %v570 = vmul.f32 %v433, %v561
      %v571 = vmul.f32 %v438, %v561
      %v572 = vmul.f32 %v443, %v561
      %v573 = vmul.f32 %v448, %v561
      %v574 = vmul.f32 %v453, %v561
      %v575 = vmul.f32 %v458, %v561
      %v576 = vmul.f32 %v463, %v561
      %v577 = vmul.f32 %v468, %v561
      %v578 = vmul.f32 %v473, %v561
      %v579 = vmul.f32 %v478, %v561
      %v580 = vmul.f32 %v483, %v561
      %v581 = vmul.f32 %v488, %v561
      %v582 = vmul.f32 %v493, %v561
      %v583 = vmul.f32 %v498, %v561
      %v584 = vmul.f32 %v503, %v561
      %v585 = vmul.f32 %v508, %v561
      %v586 = vmul.f32 %v513, %v561
      %v587 = vmul.f32 %v518, %v561
      %v588 = vmul.f32 %v523, %v561
      %v589 = vmul.f32 %v528, %v561
      %v590 = vmul.f32 %v533, %v561
      %v591 = vmul.f32 %v538, %v561
      %v592 = vmul.f32 %v543, %v561
      %v593 = vmul.f32 %v548, %v561
      %v594 = vmul.f32 %v553, %v561
      %v595 = vld [vmem:[%s3] sm:$0x1]
      %v597 = vlaneseq
      %v598 = vshrl.u32 %v597, 7
      %v599 = vsub.s32 0, %v598
      %v600 = vrot.slane %v595, %v599
      %v602 = vadd.f32 %v563, %v600
      %v603 = vadd.f32 %v564, %v600
      %v604 = vadd.f32 %v565, %v600
      %v605 = vadd.f32 %v566, %v600
      %v606 = vadd.f32 %v567, %v600
      %v607 = vadd.f32 %v568, %v600
      %v608 = vadd.f32 %v569, %v600
      %v609 = vadd.f32 %v570, %v600
      %v610 = vadd.f32 %v571, %v600
      %v611 = vadd.f32 %v572, %v600
      %v612 = vadd.f32 %v573, %v600
      %v613 = vadd.f32 %v574, %v600
      %v614 = vadd.f32 %v575, %v600
      %v615 = vadd.f32 %v576, %v600
      %v616 = vadd.f32 %v577, %v600
      %v617 = vadd.f32 %v578, %v600
      %v618 = vadd.f32 %v579, %v600
      %v619 = vadd.f32 %v580, %v600
      %v620 = vadd.f32 %v581, %v600
      %v621 = vadd.f32 %v582, %v600
      %v622 = vadd.f32 %v583, %v600
      %v623 = vadd.f32 %v584, %v600
      %v624 = vadd.f32 %v585, %v600
      %v625 = vadd.f32 %v586, %v600
      %v626 = vadd.f32 %v587, %v600
      %v627 = vadd.f32 %v588, %v600
      %v628 = vadd.f32 %v589, %v600
      %v629 = vadd.f32 %v590, %v600
      %v630 = vadd.f32 %v591, %v600
      %v631 = vadd.f32 %v592, %v600
      %v632 = vadd.f32 %v593, %v600
      %v633 = vadd.f32 %v594, %v600
      %v634 = vxor.u32 %v602, 2147483648
      %v635 = vxor.u32 %v603, 2147483648
      %v636 = vxor.u32 %v604, 2147483648
      %v637 = vxor.u32 %v605, 2147483648
      %v638 = vxor.u32 %v606, 2147483648
      %v639 = vxor.u32 %v607, 2147483648
      %v640 = vxor.u32 %v608, 2147483648
      %v641 = vxor.u32 %v609, 2147483648
      %v642 = vxor.u32 %v610, 2147483648
      %v643 = vxor.u32 %v611, 2147483648
      %v644 = vxor.u32 %v612, 2147483648
      %v645 = vxor.u32 %v613, 2147483648
      %v646 = vxor.u32 %v614, 2147483648
      %v647 = vxor.u32 %v615, 2147483648
      %v648 = vxor.u32 %v616, 2147483648
      %v649 = vxor.u32 %v617, 2147483648
      %v650 = vxor.u32 %v618, 2147483648
      %v651 = vxor.u32 %v619, 2147483648
      %v652 = vxor.u32 %v620, 2147483648
      %v653 = vxor.u32 %v621, 2147483648
      %v654 = vxor.u32 %v622, 2147483648
      %v655 = vxor.u32 %v623, 2147483648
      %v656 = vxor.u32 %v624, 2147483648
      %v657 = vxor.u32 %v625, 2147483648
      %v658 = vxor.u32 %v626, 2147483648
      %v659 = vxor.u32 %v627, 2147483648
      %v660 = vxor.u32 %v628, 2147483648
      %v661 = vxor.u32 %v629, 2147483648
      %v662 = vxor.u32 %v630, 2147483648
      %v663 = vxor.u32 %v631, 2147483648
      %v664 = vxor.u32 %v632, 2147483648
      %v665 = vxor.u32 %v633, 2147483648
      %v666 = vmul.f32 %v634, 1.442695
      %v667 = vpow.pop %v666
      %v668 = vmul.f32 %v635, 1.442695
      %v669 = vpow.pop %v668
      %v670 = vmul.f32 %v636, 1.442695
      %v671 = vpow.pop %v670
      %v672 = vmul.f32 %v637, 1.442695
      %v673 = vpow.pop %v672
      %v674 = vmul.f32 %v638, 1.442695
      %v675 = vpow.pop %v674
      %v676 = vmul.f32 %v639, 1.442695
      %v677 = vpow.pop %v676
      %v678 = vmul.f32 %v640, 1.442695
      %v679 = vpow.pop %v678
      %v680 = vmul.f32 %v641, 1.442695
      %v681 = vpow.pop %v680
      %v682 = vmul.f32 %v642, 1.442695
      %v683 = vpow.pop %v682
      %v684 = vmul.f32 %v643, 1.442695
      %v685 = vpow.pop %v684
      %v686 = vmul.f32 %v644, 1.442695
      %v687 = vpow.pop %v686
      %v688 = vmul.f32 %v645, 1.442695
      %v689 = vpow.pop %v688
      %v690 = vmul.f32 %v646, 1.442695
      %v691 = vpow.pop %v690
      %v692 = vmul.f32 %v647, 1.442695
      %v693 = vpow.pop %v692
      %v694 = vmul.f32 %v648, 1.442695
      %v695 = vpow.pop %v694
      %v696 = vmul.f32 %v649, 1.442695
      %v697 = vpow.pop %v696
      %v698 = vmul.f32 %v650, 1.442695
      %v699 = vpow.pop %v698
      %v700 = vmul.f32 %v651, 1.442695
      %v701 = vpow.pop %v700
      %v702 = vmul.f32 %v652, 1.442695
      %v703 = vpow.pop %v702
      %v704 = vmul.f32 %v653, 1.442695
      %v705 = vpow.pop %v704
      %v706 = vmul.f32 %v654, 1.442695
      %v707 = vpow.pop %v706
      %v708 = vmul.f32 %v655, 1.442695
      %v709 = vpow.pop %v708
      %v710 = vmul.f32 %v656, 1.442695
      %v711 = vpow.pop %v710
      %v712 = vmul.f32 %v657, 1.442695
      %v713 = vpow.pop %v712
      %v714 = vmul.f32 %v658, 1.442695
      %v715 = vpow.pop %v714
      %v716 = vmul.f32 %v659, 1.442695
      %v717 = vpow.pop %v716
      %v718 = vmul.f32 %v660, 1.442695
      %v719 = vpow.pop %v718
      %v720 = vmul.f32 %v661, 1.442695
      %v721 = vpow.pop %v720
      %v722 = vmul.f32 %v662, 1.442695
      %v723 = vpow.pop %v722
      %v724 = vmul.f32 %v663, 1.442695
      %v725 = vpow.pop %v724
      %v726 = vmul.f32 %v664, 1.442695
      %v727 = vpow.pop %v726
      %v728 = vmul.f32 %v665, 1.442695
      %v729 = vpow.pop %v728
      %v730 = vadd.f32 %v667, 1.0
      %v731 = vadd.f32 %v669, 1.0
      %v732 = vadd.f32 %v671, 1.0
      %v733 = vadd.f32 %v673, 1.0
      %v734 = vadd.f32 %v675, 1.0
      %v735 = vadd.f32 %v677, 1.0
      %v736 = vadd.f32 %v679, 1.0
      %v737 = vadd.f32 %v681, 1.0
      %v738 = vadd.f32 %v683, 1.0
      %v739 = vadd.f32 %v685, 1.0
      %v740 = vadd.f32 %v687, 1.0
      %v741 = vadd.f32 %v689, 1.0
      %v742 = vadd.f32 %v691, 1.0
      %v743 = vadd.f32 %v693, 1.0
      %v744 = vadd.f32 %v695, 1.0
      %v745 = vadd.f32 %v697, 1.0
      %v746 = vadd.f32 %v699, 1.0
      %v747 = vadd.f32 %v701, 1.0
      %v748 = vadd.f32 %v703, 1.0
      %v749 = vadd.f32 %v705, 1.0
      %v750 = vadd.f32 %v707, 1.0
      %v751 = vadd.f32 %v709, 1.0
      %v752 = vadd.f32 %v711, 1.0
      %v753 = vadd.f32 %v713, 1.0
      %v754 = vadd.f32 %v715, 1.0
      %v755 = vadd.f32 %v717, 1.0
      %v756 = vadd.f32 %v719, 1.0
      %v757 = vadd.f32 %v721, 1.0
      %v758 = vadd.f32 %v723, 1.0
      %v759 = vadd.f32 %v725, 1.0
      %v760 = vadd.f32 %v727, 1.0
      %v761 = vadd.f32 %v729, 1.0
      %v762 = vrcp.pop %v730
      %v763 = vmul.f32 1.0, %v762
      %v764 = vrcp.pop %v731
      %v765 = vmul.f32 1.0, %v764
      %v766 = vrcp.pop %v732
      %v767 = vmul.f32 1.0, %v766
      %v768 = vrcp.pop %v733
      %v769 = vmul.f32 1.0, %v768
      %v770 = vrcp.pop %v734
      %v771 = vmul.f32 1.0, %v770
      %v772 = vrcp.pop %v735
      %v773 = vmul.f32 1.0, %v772
      %v774 = vrcp.pop %v736
      %v775 = vmul.f32 1.0, %v774
      %v776 = vrcp.pop %v737
      %v777 = vmul.f32 1.0, %v776
      %v778 = vrcp.pop %v738
      %v779 = vmul.f32 1.0, %v778
      %v780 = vrcp.pop %v739
      %v781 = vmul.f32 1.0, %v780
      %v782 = vrcp.pop %v740
      %v783 = vmul.f32 1.0, %v782
      %v784 = vrcp.pop %v741
      %v785 = vmul.f32 1.0, %v784
      %v786 = vrcp.pop %v742
      %v787 = vmul.f32 1.0, %v786
      %v788 = vrcp.pop %v743
      %v789 = vmul.f32 1.0, %v788
      %v790 = vrcp.pop %v744
      %v791 = vmul.f32 1.0, %v790
      %v792 = vrcp.pop %v745
      %v793 = vmul.f32 1.0, %v792
      %v794 = vrcp.pop %v746
      %v795 = vmul.f32 1.0, %v794
      %v796 = vrcp.pop %v747
      %v797 = vmul.f32 1.0, %v796
      %v798 = vrcp.pop %v748
      %v799 = vmul.f32 1.0, %v798
      %v800 = vrcp.pop %v749
      %v801 = vmul.f32 1.0, %v800
      %v802 = vrcp.pop %v750
      %v803 = vmul.f32 1.0, %v802
      %v804 = vrcp.pop %v751
      %v805 = vmul.f32 1.0, %v804
      %v806 = vrcp.pop %v752
      %v807 = vmul.f32 1.0, %v806
      %v808 = vrcp.pop %v753
      %v809 = vmul.f32 1.0, %v808
      %v810 = vrcp.pop %v754
      %v811 = vmul.f32 1.0, %v810
      %v812 = vrcp.pop %v755
      %v813 = vmul.f32 1.0, %v812
      %v814 = vrcp.pop %v756
      %v815 = vmul.f32 1.0, %v814
      %v816 = vrcp.pop %v757
      %v817 = vmul.f32 1.0, %v816
      %v818 = vrcp.pop %v758
      %v819 = vmul.f32 1.0, %v818
      %v820 = vrcp.pop %v759
      %v821 = vmul.f32 1.0, %v820
      %v822 = vrcp.pop %v760
      %v823 = vmul.f32 1.0, %v822
      %v824 = vrcp.pop %v761
      %v825 = vmul.f32 1.0, %v824
      %v826 = vmul.f32 %v602, %v763
      %v827 = vmul.f32 %v603, %v765
      %v828 = vmul.f32 %v604, %v767
      %v829 = vmul.f32 %v605, %v769
      %v830 = vmul.f32 %v606, %v771
      %v831 = vmul.f32 %v607, %v773
      %v832 = vmul.f32 %v608, %v775
      %v833 = vmul.f32 %v609, %v777
      %v834 = vmul.f32 %v610, %v779
      %v835 = vmul.f32 %v611, %v781
      %v836 = vmul.f32 %v612, %v783
      %v837 = vmul.f32 %v613, %v785
      %v838 = vmul.f32 %v614, %v787
      %v839 = vmul.f32 %v615, %v789
      %v840 = vmul.f32 %v616, %v791
      %v841 = vmul.f32 %v617, %v793
      %v842 = vmul.f32 %v618, %v795
      %v843 = vmul.f32 %v619, %v797
      %v844 = vmul.f32 %v620, %v799
      %v845 = vmul.f32 %v621, %v801
      %v846 = vmul.f32 %v622, %v803
      %v847 = vmul.f32 %v623, %v805
      %v848 = vmul.f32 %v624, %v807
      %v849 = vmul.f32 %v625, %v809
      %v850 = vmul.f32 %v626, %v811
      %v851 = vmul.f32 %v627, %v813
      %v852 = vmul.f32 %v628, %v815
      %v853 = vmul.f32 %v629, %v817
      %v854 = vmul.f32 %v630, %v819
      %v855 = vmul.f32 %v631, %v821
      %v856 = vmul.f32 %v632, %v823
      %v857 = vmul.f32 %v633, %v825
      %vm858 = vcmask 31744
      %859 = vst.msk [vmem:[%s199] sm:$0xff] %vm858, %v826
      %860 = vst.msk [vmem:[%s199 + $0x8] sm:$0xff] %vm858, %v827
      %861 = vst.msk [vmem:[%s199 + $0x10] sm:$0xff] %vm858, %v828
      %862 = vst.msk [vmem:[%s199 + $0x18] sm:$0xff] %vm858, %v829
      %863 = vst.msk [vmem:[%s199 + $0x20] sm:$0xff] %vm858, %v830
      %864 = vst.msk [vmem:[%s199 + $0x28] sm:$0xff] %vm858, %v831
      %865 = vst.msk [vmem:[%s199 + $0x30] sm:$0xff] %vm858, %v832
      %866 = vst.msk [vmem:[%s199 + $0x38] sm:$0xff] %vm858, %v833
      %867 = vst.msk [vmem:[%s199 + $0x40] sm:$0xff] %vm858, %v834
      %868 = vst.msk [vmem:[%s199 + $0x48] sm:$0xff] %vm858, %v835
      %869 = vst.msk [vmem:[%s199 + $0x50] sm:$0xff] %vm858, %v836
      %870 = vst.msk [vmem:[%s199 + $0x58] sm:$0xff] %vm858, %v837
      %871 = vst.msk [vmem:[%s199 + $0x60] sm:$0xff] %vm858, %v838
      %872 = vst.msk [vmem:[%s199 + $0x68] sm:$0xff] %vm858, %v839
      %873 = vst.msk [vmem:[%s199 + $0x70] sm:$0xff] %vm858, %v840
      %874 = vst.msk [vmem:[%s199 + $0x78] sm:$0xff] %vm858, %v841
      %875 = vst.msk [vmem:[%s199 + $0x80] sm:$0xff] %vm858, %v842
      %876 = vst.msk [vmem:[%s199 + $0x88] sm:$0xff] %vm858, %v843
      %877 = vst.msk [vmem:[%s199 + $0x90] sm:$0xff] %vm858, %v844
      %878 = vst.msk [vmem:[%s199 + $0x98] sm:$0xff] %vm858, %v845
      %879 = vst.msk [vmem:[%s199 + $0xa0] sm:$0xff] %vm858, %v846
      %880 = vst.msk [vmem:[%s199 + $0xa8] sm:$0xff] %vm858, %v847
      %881 = vst.msk [vmem:[%s199 + $0xb0] sm:$0xff] %vm858, %v848
      %882 = vst.msk [vmem:[%s199 + $0xb8] sm:$0xff] %vm858, %v849
      %883 = vst.msk [vmem:[%s199 + $0xc0] sm:$0xff] %vm858, %v850
      %884 = vst.msk [vmem:[%s199 + $0xc8] sm:$0xff] %vm858, %v851
      %885 = vst.msk [vmem:[%s199 + $0xd0] sm:$0xff] %vm858, %v852
      %886 = vst.msk [vmem:[%s199 + $0xd8] sm:$0xff] %vm858, %v853
      %887 = vst.msk [vmem:[%s199 + $0xe0] sm:$0xff] %vm858, %v854
      %888 = vst.msk [vmem:[%s199 + $0xe8] sm:$0xff] %vm858, %v855
      %889 = vst.msk [vmem:[%s199 + $0xf0] sm:$0xff] %vm858, %v856
      %890 = vst.msk [vmem:[%s199 + $0xf8] sm:$0xff] %vm858, %v857
      %s891 = smul.u32 32, %s15
      %p892 = scmp.lt.s32.totalorder %s891, 63
      %s893 = scalar_select %p892, %s891, 63
      %s894 = smul.addr %s893, 8
      %s895 = scalar_lea.vmem %s4, %s894
      // Predicated region
      $region37: #{tpu_custom_call.1} parent=35 // pred_check
        %p896 = pneg %p122
      $region38: #{tpu_custom_call.1} parent=35 // pred_check_branch
        %898 = sbr.rel (%p896) target = $region40
      $region39: #{tpu_custom_call.1} parent=35 // pred_region
        %s899 = smul.u32 32, %s15
      $region40: #{tpu_custom_call.1} parent=35 // pred_fallthru
        _
    $region36: #{tpu_custom_call.1} parent=5 // pred_fallthru
      _
    %p900 = scmp.le.s32.totalorder 2, %s10
    // Predicated region
    $region41: #{tpu_custom_call.1} parent=5 // pred_check
      %p901 = pneg %p900
    $region42: #{tpu_custom_call.1} parent=5 // pred_check_branch
      %903 = sbr.rel (%p901) target = $region44
    $region43: #{tpu_custom_call.1} parent=5 // pred_region
      %s904 = ssub.s32 %s10, 2
      // Predicated region
      $region45: #{tpu_custom_call.1} parent=43 // pred_check
        %p905 = pneg %p128
      $region46: #{tpu_custom_call.1} parent=43 // pred_check_branch
        %907 = sbr.rel (%p905) target = $region48
      $region47: #{tpu_custom_call.1} parent=43 // pred_region
        %s908 = smul.u32 32, %s16
        %p909 = scmp.lt.s32.totalorder %s908, 63
        %s910 = scalar_select %p909, %s908, 63
        %s911 = smul.addr %s910, 8
        %s912 = scalar_lea.vmem %s4, %s911
      $region48: #{tpu_custom_call.1} parent=43 // pred_fallthru
        _
    $region44: #{tpu_custom_call.1} parent=5 // pred_fallthru
      _
  $region6: #{tpu_custom_call.1} parent=0 // loop_footer
    %s14 = sadd.s32 1, %s10
  $region7: #{tpu_custom_call.1} parent=0 // loop_footer_branch
    %9 = sbr.rel target = $region3
  $region8: #{tpu_custom_call.1} parent=0 // loop_exit
    _

</llo_original>
